<compile_context>
chip_gen: v7x
topology: tpu7x:2x2x1
jax: 0.10.0
libtpu: 0.0.40
codegen_flags: <defaults>
</compile_context>

<pallas_src>
import functools

import jax
import jax.numpy as jnp
from jax.experimental import pallas as pl
from jax.experimental.pallas import tpu as pltpu

LN_EPS = 1e-5                       # config.layer_norm_eps


def _round_up(x, m):
    return ((x + m - 1) // m) * m


def _vmem_limit_bytes():
    # ~75% of physical VMEM: ~96 MiB on v5e/v6e (128 MiB), ~48 MiB on v7x (64 MiB).
    try:
        cap = getattr(pltpu.get_tpu_info(), "vmem_capacity_bytes", None)
    except Exception:
        cap = None
    if not cap:
        cap = 64 * 1024 * 1024
    return int(cap) * 3 // 4


# ----------------------------------------------------------------------------
# Kernel 1: fused dense (H->H) + GELU + LayerNorm over a row tile.
# bf16 MXU operands, f32 accumulation / normalization, bf16 output.
# ----------------------------------------------------------------------------
def _dense_gelu_ln_kernel(x_ref, w_ref, b_ref, gamma_ref, beta_ref, o_ref, *, eps):
    x = x_ref[...].astype(jnp.bfloat16)                       # (tm, H) bf16
    h = jnp.dot(x, w_ref[...], preferred_element_type=jnp.float32)
    h = h + b_ref[...]                                        # (tm, H) + (1, H)
    # tanh GELU lowers to the EUP (its own VLIW slot) instead of a long erf
    # VPU polynomial; deviates <~1e-3 from torch's exact-erf default, well
    # inside the bf16-matmul tolerance of this head.
    h = jax.nn.gelu(h, approximate=True)
    # Single-pass LayerNorm statistics: var = E[x^2] - mean^2 (saves one full
    # (tm,H) VPU pass + one cross-lane reduction vs mean-then-centered-square).
    inv_h = 1.0 / h.shape[-1]
    mean = jnp.sum(h, axis=-1, keepdims=True) * inv_h
    var = jnp.maximum(jnp.sum(h * h, axis=-1, keepdims=True) * inv_h - mean * mean, 0.0)
    hn = (h - mean) * jax.lax.rsqrt(var + eps)
    o_ref[...] = (hn * gamma_ref[...] + beta_ref[...]).astype(o_ref.dtype)


# ----------------------------------------------------------------------------
# Kernel 2: decoder matmul (H->V) + bias. bf16 inputs, f32 accumulation.
# ----------------------------------------------------------------------------
def _decoder_kernel(h_ref, w_ref, b_ref, o_ref):
    acc = jnp.dot(h_ref[...], w_ref[...], preferred_element_type=jnp.float32)
    o_ref[...] = (acc + b_ref[...]).astype(o_ref.dtype)


def roberta_lm_head(features, params, *, tm_dense=1024, tm_dec=512, tn=4096,
                    out_dtype=jnp.float32):
    """features: [B, S, H] float32 -> logits [B, S, V] in out_dtype (f32 default)."""
    B, S, H = features.shape
    V = params["decoder_w_t"].shape[1]
    M = B * S

    # Row tiles: big tile for the fused dense/GELU/LN kernel; a decoder row
    # tile that divides it so a single padded Mp serves both kernels.
    tm_dense = min(tm_dense, _round_up(M, 8))
    tm_dec = min(tm_dec, tm_dense)
    if tm_dense % tm_dec:
        tm_dec = tm_dense
    Mp = _round_up(M, tm_dense)

    # Vocab tile: lane-dense multiple of 128. tn=4096 halves vocab passes vs
    # 2048 while fitting v7x's 64 MiB VMEM; on compute-bound v5e a smaller tn
    # (e.g. 1024) trims the ~2% padded-vocab MXU waste instead.
    tn = min(tn, _round_up(V, 128))
    Vp = _round_up(V, tn)

    x2d = features.reshape(M, H).astype(jnp.float32)
    if Mp != M:
        x2d = jnp.pad(x2d, ((0, Mp - M), (0, 0)))

    # bf16 MXU operands for both matmuls; bias / LN params stay f32.
    dense_w = params["dense_w_t"].astype(jnp.bfloat16)
    dec_w = params["decoder_w_t"].astype(jnp.bfloat16)
    dec_b = params["decoder_b"]
    if Vp != V:
        dec_w = jnp.pad(dec_w, ((0, 0), (0, Vp - V)))
        dec_b = jnp.pad(dec_b, ((0, 0), (0, Vp - V)))

    vmem_limit = _vmem_limit_bytes()

    # --- fused dense + gelu + layernorm (h written to HBM in bf16) ---
    # Constant-index operands are single-buffered (fetched once, no second
    # buffer wasted) -- matters most on v7x's 64 MiB VMEM.
    h = pl.pallas_call(
        functools.partial(_dense_gelu_ln_kernel, eps=LN_EPS),
        out_shape=jax.ShapeDtypeStruct((Mp, H), jnp.bfloat16),
        grid_spec=pltpu.PrefetchScalarGridSpec(
            num_scalar_prefetch=0,
            grid=(Mp // tm_dense,),
            in_specs=[
                pl.BlockSpec((tm_dense, H), lambda i: (i, 0)),   # x tile
                pl.BlockSpec((H, H), lambda i: (0, 0),
                             pipeline_mode=pl.Buffered(1)),      # dense W^T (bf16)
                pl.BlockSpec((1, H), lambda i: (0, 0),
                             pipeline_mode=pl.Buffered(1)),      # dense bias
                pl.BlockSpec((1, H), lambda i: (0, 0),
                             pipeline_mode=pl.Buffered(1)),      # ln gamma
                pl.BlockSpec((1, H), lambda i: (0, 0),
                             pipeline_mode=pl.Buffered(1)),      # ln beta
            ],
            out_specs=pl.BlockSpec((tm_dense, H), lambda i: (i, 0)),
        ),
        compiler_params=pltpu.CompilerParams(
            dimension_semantics=("parallel",),
            vmem_limit_bytes=vmem_limit),
    )(x2d, dense_w, params["dense_b"], params["ln_gamma"], params["ln_beta"])

    # --- decoder projection to vocab ---
    # Vocab axis OUTER / rows INNER: each (H, tn) weight block is fetched from
    # HBM once and stays VMEM-resident across the inner row loop; only the
    # small bf16 h tiles re-stream. Rows axis is "arbitrary" so any multi-core
    # (v7x) split lands on the vocab axis and weight blocks are not duplicated.
    out_bytes = jnp.dtype(out_dtype).itemsize
    logits = pl.pallas_call(
        _decoder_kernel,
        out_shape=jax.ShapeDtypeStruct((Mp, Vp), out_dtype),
        grid_spec=pltpu.PrefetchScalarGridSpec(
            num_scalar_prefetch=0,
            grid=(Vp // tn, Mp // tm_dec),
            in_specs=[
                pl.BlockSpec((tm_dec, H), lambda j, i: (i, 0)),   # h tile (bf16)
                pl.BlockSpec((H, tn), lambda j, i: (0, j)),       # decoder W^T block
                pl.BlockSpec((1, tn), lambda j, i: (0, j)),       # decoder bias block
            ],
            out_specs=pl.BlockSpec((tm_dec, tn), lambda j, i: (i, j)),
        ),
        compiler_params=pltpu.CompilerParams(
            dimension_semantics=("parallel", "arbitrary"),
            vmem_limit_bytes=vmem_limit),
        cost_estimate=pl.CostEstimate(
            flops=2 * Mp * H * Vp,
            transcendentals=0,
            bytes_accessed=((Vp // tn) * Mp * H * 2    # h re-read once per vocab pass
                            + H * Vp * 2               # bf16 decoder weights, once
                            + Vp * 4                   # bias
                            + Mp * Vp * out_bytes)),   # logits write
    )(h, dec_w, dec_b)

    return logits[:M, :V].reshape(B, S, V)


def init_params(key, hidden, vocab):
    k1, k2 = jax.random.split(key, 2)
    scale = 0.02
    return {
        # nn.Linear weight is (out, in); store transposed (in, out) for x @ W
        "dense_w_t": (scale * jax.random.normal(k1, (hidden, hidden))).astype(jnp.float32),
        "dense_b": jnp.zeros((1, hidden), jnp.float32),
        "ln_gamma": jnp.ones((1, hidden), jnp.float32),
        "ln_beta": jnp.zeros((1, hidden), jnp.float32),
        "decoder_w_t": (scale * jax.random.normal(k2, (hidden, vocab))).astype(jnp.float32),
        "decoder_b": jnp.zeros((1, vocab), jnp.float32),  # self.bias (zeros)
    }


if __name__ == "__main__":
    # Small, TPU-friendly shapes consistent with the module's forward:
    # features [batch, seq, hidden]; vocab is the decoder output width.
    B, S, H, V = 2, 8, 128, 512

    key = jax.random.PRNGKey(0)
    kx, kp = jax.random.split(key)
    features = jax.random.normal(kx, (B, S, H), dtype=jnp.float32)
    params = init_params(kp, H, V)

    out = roberta_lm_head(features, params)
    jax.block_until_ready(out)

    # sanity check against plain-JAX f32 reference using the module's exact
    # (erf) GELU. The kernel uses bf16 MXU operands + tanh GELU, both of which
    # stay well inside the 3e-2 tolerance at these scales.
    x = features.reshape(-1, H)
    h = x @ params["dense_w_t"] + params["dense_b"]
    h = jax.nn.gelu(h, approximate=False)
    mu = h.mean(-1, keepdims=True)
    var = ((h - mu) ** 2).mean(-1, keepdims=True)
    h = (h - mu) / jnp.sqrt(var + LN_EPS) * params["ln_gamma"] + params["ln_beta"]
    ref = (h @ params["decoder_w_t"] + params["decoder_b"]).reshape(B, S, V)
    assert jnp.allclose(out, ref, atol=3e-2, rtol=3e-2), "mismatch vs reference"

    print("KERNEL_OK")
</pallas_src>

<mosaic_0001>
module attributes {stable_mosaic.version = 11 : i64} {
  func.func @_dense_gelu_ln_kernel(%arg0: i32, %arg1: memref<16x128xf32, #tpu.memory_space<vmem>>, %arg2: memref<128x128xbf16, #tpu.memory_space<vmem>>, %arg3: memref<1x128xf32, #tpu.memory_space<vmem>>, %arg4: memref<1x128xf32, #tpu.memory_space<vmem>>, %arg5: memref<1x128xf32, #tpu.memory_space<vmem>>, %arg6: memref<16x128xbf16, #tpu.memory_space<vmem>>) attributes {dimension_semantics = [#tpu.dimension_semantics<parallel>], iteration_bounds = array<i64: 1>, scalar_prefetch = 0 : i64, scratch_operands = 0 : i64, tpu.core_type = #tpu.core_type<tc>, window_params = [{transform_indices = @transform_0, window_bounds = array<i64: 16, 128>}, {pipeline_mode = #tpu.pipeline_mode<synchronous>, transform_indices = @transform_1, window_bounds = array<i64: 128, 128>}, {pipeline_mode = #tpu.pipeline_mode<synchronous>, transform_indices = @transform_2, window_bounds = array<i64: 1, 128>}, {pipeline_mode = #tpu.pipeline_mode<synchronous>, transform_indices = @transform_3, window_bounds = array<i64: 1, 128>}, {pipeline_mode = #tpu.pipeline_mode<synchronous>, transform_indices = @transform_4, window_bounds = array<i64: 1, 128>}, {transform_indices = @transform_5, window_bounds = array<i64: 16, 128>}]} {
    %c0 = arith.constant 0 : index
    %c0_0 = arith.constant 0 : index
    %0 = vector.load %arg1[%c0, %c0_0] : memref<16x128xf32, #tpu.memory_space<vmem>>, vector<16x128xf32>
    %1 = arith.truncf %0 : vector<16x128xf32> to vector<16x128xbf16>
    %c0_1 = arith.constant 0 : index
    %c0_2 = arith.constant 0 : index
    %2 = vector.load %arg2[%c0_1, %c0_2] : memref<128x128xbf16, #tpu.memory_space<vmem>>, vector<128x128xbf16>
    %cst = arith.constant dense<0.000000e+00> : vector<16x128xf32>
    %3 = tpu.matmul %1, %2, %cst {dimension_numbers = #tpu.dot_dimension_numbers<[1], [0], [0], [1], [0, 0, 1, 1], [], []>} : vector<16x128xbf16>, vector<128x128xbf16>, vector<16x128xf32> -> vector<16x128xf32>
    %c0_3 = arith.constant 0 : index
    %c0_4 = arith.constant 0 : index
    %4 = vector.load %arg3[%c0_3, %c0_4] : memref<1x128xf32, #tpu.memory_space<vmem>>, vector<1x128xf32>
    %5 = vector.broadcast %4 : vector<1x128xf32> to vector<16x128xf32>
    %6 = arith.addf %3, %5 : vector<16x128xf32>
    %7 = arith.mulf %6, %6 : vector<16x128xf32>
    %8 = arith.mulf %6, %7 : vector<16x128xf32>
    %cst_5 = arith.constant 4.471500e-02 : f32
    %9 = vector.broadcast %cst_5 : f32 to vector<16x128xf32>
    %10 = arith.mulf %9, %8 : vector<16x128xf32>
    %11 = arith.addf %6, %10 : vector<16x128xf32>
    %cst_6 = arith.constant 0.797884583 : f32
    %12 = vector.broadcast %cst_6 : f32 to vector<16x128xf32>
    %13 = arith.mulf %12, %11 : vector<16x128xf32>
    %14 = math.tanh %13 : vector<16x128xf32>
    %cst_7 = arith.constant 1.000000e+00 : f32
    %15 = vector.broadcast %cst_7 : f32 to vector<16x128xf32>
    %16 = arith.addf %15, %14 : vector<16x128xf32>
    %cst_8 = arith.constant 5.000000e-01 : f32
    %17 = vector.broadcast %cst_8 : f32 to vector<16x128xf32>
    %18 = arith.mulf %17, %16 : vector<16x128xf32>
    %19 = arith.mulf %6, %18 : vector<16x128xf32>
    %cst_9 = arith.constant dense<0.000000e+00> : vector<16xf32>
    %20 = vector.multi_reduction <add>, %19, %cst_9 [1] : vector<16x128xf32> to vector<16xf32>
    %21 = vector.shape_cast %20 : vector<16xf32> to vector<16x1xf32>
    %cst_10 = arith.constant 7.812500e-03 : f32
    %22 = vector.broadcast %cst_10 : f32 to vector<16x1xf32>
    %23 = arith.mulf %21, %22 : vector<16x1xf32>
    %24 = arith.mulf %19, %19 : vector<16x128xf32>
    %cst_11 = arith.constant dense<0.000000e+00> : vector<16xf32>
    %25 = vector.multi_reduction <add>, %24, %cst_11 [1] : vector<16x128xf32> to vector<16xf32>
    %26 = vector.shape_cast %25 : vector<16xf32> to vector<16x1xf32>
    %cst_12 = arith.constant 7.812500e-03 : f32
    %27 = vector.broadcast %cst_12 : f32 to vector<16x1xf32>
    %28 = arith.mulf %26, %27 : vector<16x1xf32>
    %29 = arith.mulf %23, %23 : vector<16x1xf32>
    %30 = arith.subf %28, %29 : vector<16x1xf32>
    %cst_13 = arith.constant 0.000000e+00 : f32
    %31 = vector.broadcast %cst_13 : f32 to vector<16x1xf32>
    %32 = arith.maximumf %30, %31 : vector<16x1xf32>
    %33 = vector.broadcast %23 : vector<16x1xf32> to vector<16x128xf32>
    %34 = arith.subf %19, %33 : vector<16x128xf32>
    %cst_14 = arith.constant 9.99999974E-6 : f32
    %35 = vector.broadcast %cst_14 : f32 to vector<16x1xf32>
    %36 = arith.addf %32, %35 : vector<16x1xf32>
    %37 = math.rsqrt %36 : vector<16x1xf32>
    %38 = vector.broadcast %37 : vector<16x1xf32> to vector<16x128xf32>
    %39 = arith.mulf %34, %38 : vector<16x128xf32>
    %c0_15 = arith.constant 0 : index
    %c0_16 = arith.constant 0 : index
    %40 = vector.load %arg4[%c0_15, %c0_16] : memref<1x128xf32, #tpu.memory_space<vmem>>, vector<1x128xf32>
    %41 = vector.broadcast %40 : vector<1x128xf32> to vector<16x128xf32>
    %42 = arith.mulf %39, %41 : vector<16x128xf32>
    %c0_17 = arith.constant 0 : index
    %c0_18 = arith.constant 0 : index
    %43 = vector.load %arg5[%c0_17, %c0_18] : memref<1x128xf32, #tpu.memory_space<vmem>>, vector<1x128xf32>
    %44 = vector.broadcast %43 : vector<1x128xf32> to vector<16x128xf32>
    %45 = arith.addf %42, %44 : vector<16x128xf32>
    %46 = arith.truncf %45 : vector<16x128xf32> to vector<16x128xbf16>
    %c0_19 = arith.constant 0 : index
    %c0_20 = arith.constant 0 : index
    %47 = vector.load %arg6[%c0_19, %c0_20] : memref<16x128xbf16, #tpu.memory_space<vmem>>, vector<16x128xbf16>
    tpu.vector_store %arg6[%c0_19, %c0_20], %46 {strides = array<i32>} : memref<16x128xbf16, #tpu.memory_space<vmem>>, vector<16x128xbf16>,
    return
  }
  func.func @transform_0(%arg0: i32) -> (i32, i32) {
    %c0_i32 = arith.constant 0 : i32
    %c0_i32_0 = arith.constant 0 : i32
    return %arg0, %c0_i32 : i32, i32
  }
  func.func @transform_1(%arg0: i32) -> (i32, i32) {
    %c0_i32 = arith.constant 0 : i32
    %c0_i32_0 = arith.constant 0 : i32
    %c0_i32_1 = arith.constant 0 : i32
    return %c0_i32, %c0_i32_0 : i32, i32
  }
  func.func @transform_2(%arg0: i32) -> (i32, i32) {
    %c0_i32 = arith.constant 0 : i32
    %c0_i32_0 = arith.constant 0 : i32
    %c0_i32_1 = arith.constant 0 : i32
    return %c0_i32, %c0_i32_0 : i32, i32
  }
  func.func @transform_3(%arg0: i32) -> (i32, i32) {
    %c0_i32 = arith.constant 0 : i32
    %c0_i32_0 = arith.constant 0 : i32
    %c0_i32_1 = arith.constant 0 : i32
    return %c0_i32, %c0_i32_0 : i32, i32
  }
  func.func @transform_4(%arg0: i32) -> (i32, i32) {
    %c0_i32 = arith.constant 0 : i32
    %c0_i32_0 = arith.constant 0 : i32
    %c0_i32_1 = arith.constant 0 : i32
    return %c0_i32, %c0_i32_0 : i32, i32
  }
  func.func @transform_5(%arg0: i32) -> (i32, i32) {
    %c0_i32 = arith.constant 0 : i32
    %c0_i32_0 = arith.constant 0 : i32
    return %arg0, %c0_i32 : i32, i32
  }
}

</mosaic_0001>

<llo_original>
// kernel: tpu_custom_call.1
$region0: #{tpu_custom_call.1}
  #allocation0 [shape = 'u32[]', space=smem, size = 0x4, offset = 0x4, fixed_abs, tag = 'smem constant byte address 0x4 - core index']
  #allocation1 [shape = 'u32[144,128]{1,0:T(1,128)}', space=vmem, size = 0x12000, scoped, tag = 'internal scratch']
  %s0 = inlined_call_operand.hbm [shape: f32[16,128], index: 0, kind: input, shape index: {}]
  %s1 = inlined_call_operand.hbm [shape: bf16[128,128], index: 1, kind: input, shape index: {}]
  %s2 = inlined_call_operand.vmem [shape: f32[1,128], index: 2, kind: input, shape index: {}]
  %s3 = inlined_call_operand.vmem [shape: f32[1,128], index: 3, kind: input, shape index: {}]
  %s4 = inlined_call_operand.vmem [shape: f32[1,128], index: 4, kind: input, shape index: {}]
  %s5 = inlined_call_operand.hbm [shape: bf16[16,128], index: 5, kind: output, shape index: {}]
  %s6 = sld [smem:[#allocation0]]
  $region38: #{tpu_custom_call.1} parent=0
    _
  %s8 = ssub.s32 1, %s6
  %s9 = scalar_select 0, %s8, %s6
  $region1: #{tpu_custom_call.1} parent=0
    #allocation2 [shape = 'u8[8192]{0}', space=vmem, size = 0x2000, scoped, tag = 'input window, operand 0, single buffered']
    #allocation3 [shape = 's32[1]{0}', space=sflag, size = 0x4, scoped, tag = 'scoped memory for tpu_custom_call.1']
    #allocation4 [shape = 's32[1]{0}', space=sflag, size = 0x4, scoped, tag = 'scoped memory for tpu_custom_call.1']
    #allocation5 [shape = 'u8[32768]{0}', space=vmem, size = 0x8000, scoped, tag = 'input window, operand 1, single buffered']
    #allocation6 [shape = 's32[1]{0}', space=sflag, size = 0x4, scoped, tag = 'scoped memory for tpu_custom_call.1']
    #allocation7 [shape = 'u8[4096]{0}', space=vmem, size = 0x1000, scoped, tag = 'output window, operand 0, single buffered']
    %10 = vsyncpa [#allocation3], 0
    %11 = vsyncpa [#allocation6], 0
    %12 = vsyncpa [#allocation4], 0
    // Predicated region
    $region2: #{tpu_custom_call.1} parent=1 // pred_check
      _
    $region3: #{tpu_custom_call.1} parent=1 // pred_check_branch
      %14 = sbr.rel (0) target = $region5
    $region4: #{tpu_custom_call.1} parent=1 // pred_region
      %s16 = ssub.s32 256, 256
      %17 = vsyncadd [#allocation3], %s16
      %s18 = sshll.u32 [#allocation2], 4
      %s19 = int_to_ptr.vmem [resolvable:$true] %s18
      %24 = dma.hbm_to_vmem [thread:$0]  %s0, 256, %s19, [#allocation3], 128, 128, 8
    $region5: #{tpu_custom_call.1} parent=1 // pred_fallthru
      _
    // Predicated region
    $region6: #{tpu_custom_call.1} parent=1 // pred_check
      _
    $region7: #{tpu_custom_call.1} parent=1 // pred_check_branch
      %26 = sbr.rel (0) target = $region9
    $region8: #{tpu_custom_call.1} parent=1 // pred_region
      %s28 = ssub.s32 1024, 1024
      %29 = vsyncadd [#allocation6], %s28
      %s30 = sshll.u32 [#allocation5], 4
      %s31 = int_to_ptr.vmem [resolvable:$true] %s30
      %36 = dma.hbm_to_vmem [thread:$0]  %s1, 1024, %s31, [#allocation6], 64, 64, 4
    $region9: #{tpu_custom_call.1} parent=1 // pred_fallthru
      _
    // Predicated region
    $region10: #{tpu_custom_call.1} parent=1 // pred_check
      _
    $region11: #{tpu_custom_call.1} parent=1 // pred_check_branch
      %38 = sbr.rel (0) target = $region13
    $region12: #{tpu_custom_call.1} parent=1 // pred_region
      _
    $region13: #{tpu_custom_call.1} parent=1 // pred_fallthru
      _
    // Predicated region
    $region14: #{tpu_custom_call.1} parent=1 // pred_check
      _
    $region15: #{tpu_custom_call.1} parent=1 // pred_check_branch
      %40 = sbr.rel (0) target = $region17
    $region16: #{tpu_custom_call.1} parent=1 // pred_region
      _
    $region17: #{tpu_custom_call.1} parent=1 // pred_fallthru
      _
    // Predicated region
    $region18: #{tpu_custom_call.1} parent=1 // pred_check
      _
    $region19: #{tpu_custom_call.1} parent=1 // pred_check_branch
      %42 = sbr.rel (0) target = $region21
    $region20: #{tpu_custom_call.1} parent=1 // pred_region
      _
    $region21: #{tpu_custom_call.1} parent=1 // pred_fallthru
      _
    // Predicated region
    $region22: #{tpu_custom_call.1} parent=1 // pred_check
      _
    $region23: #{tpu_custom_call.1} parent=1 // pred_check_branch
      %44 = sbr.rel (0) target = $region25
    $region24: #{tpu_custom_call.1} parent=1 // pred_region
      %45 = dma.done [#allocation3], 256
    $region25: #{tpu_custom_call.1} parent=1 // pred_fallthru
      _
    // Predicated region
    $region26: #{tpu_custom_call.1} parent=1 // pred_check
      _
    $region27: #{tpu_custom_call.1} parent=1 // pred_check_branch
      %47 = sbr.rel (0) target = $region29
    $region28: #{tpu_custom_call.1} parent=1 // pred_region
      %48 = dma.done [#allocation6], 1024
    $region29: #{tpu_custom_call.1} parent=1 // pred_fallthru
      _
    %v50 = vld [vmem:[#allocation2] sm:$0xff]
    %v51 = vld [vmem:[#allocation2 + $0x8] sm:$0xff]
    %v52 = vpack.c.bf16 %v51, %v50
    %v53 = vld [vmem:[#allocation5] sm:$0xf]
    %v54 = vld [vmem:[#allocation5 + $0x4] sm:$0xf]
    %v55 = vld [vmem:[#allocation5 + $0x8] sm:$0xf]
    %v56 = vld [vmem:[#allocation5 + $0xc] sm:$0xf]
    %v57 = vld [vmem:[#allocation5 + $0x10] sm:$0xf]
    %v58 = vld [vmem:[#allocation5 + $0x14] sm:$0xf]
    %v59 = vld [vmem:[#allocation5 + $0x18] sm:$0xf]
    %v60 = vld [vmem:[#allocation5 + $0x1c] sm:$0xf]
    %v61 = vld [vmem:[#allocation5 + $0x20] sm:$0xf]
    %v62 = vld [vmem:[#allocation5 + $0x24] sm:$0xf]
    %v63 = vld [vmem:[#allocation5 + $0x28] sm:$0xf]
    %v64 = vld [vmem:[#allocation5 + $0x2c] sm:$0xf]
    %v65 = vld [vmem:[#allocation5 + $0x30] sm:$0xf]
    %v66 = vld [vmem:[#allocation5 + $0x34] sm:$0xf]
    %v67 = vld [vmem:[#allocation5 + $0x38] sm:$0xf]
    %v68 = vld [vmem:[#allocation5 + $0x3c] sm:$0xf]
    %v69 = vld [vmem:[%s2] sm:$0x1]
    %v71 = vlaneseq
    %v72 = vshrl.u32 %v71, 7
    %v73 = vsub.s32 0, %v72
    %v74 = vrot.slane %v69, %v73
    %v92 = vunpack.c.l.b16 %v53
    %v93 = vunpack.c.l.b16 %v54
    %v94 = vunpack.c.l.b16 %v55
    %v95 = vunpack.c.l.b16 %v56
    %v96 = vunpack.c.l.b16 %v57
    %v97 = vunpack.c.l.b16 %v58
    %v98 = vunpack.c.l.b16 %v59
    %v99 = vunpack.c.l.b16 %v60
    %v100 = vunpack.c.l.b16 %v61
    %v101 = vunpack.c.l.b16 %v62
    %v102 = vunpack.c.l.b16 %v63
    %v103 = vunpack.c.l.b16 %v64
    %v104 = vunpack.c.l.b16 %v65
    %v105 = vunpack.c.l.b16 %v66
    %v106 = vunpack.c.l.b16 %v67
    %v107 = vunpack.c.l.b16 %v68
    %v108 = vpack.c.b16 %v93, %v92
    %v109 = vpack.c.b16 %v95, %v94
    %v110 = vpack.c.b16 %v97, %v96
    %v111 = vpack.c.b16 %v99, %v98
    %v112 = vpack.c.b16 %v101, %v100
    %v113 = vpack.c.b16 %v103, %v102
    %v114 = vpack.c.b16 %v105, %v104
    %v115 = vpack.c.b16 %v107, %v106
    %124 = vmatprep.subr.bf16.mxu0 0
    %125 = vmatpush1.bf16.msra.mxu0 %v108
    %126 = vmatprep.subr.bf16.mxu0 0
    %127 = vmatpush1.bf16.msra.mxu0 %v109
    %128 = vmatprep.subr.bf16.mxu0 0
    %129 = vmatpush1.bf16.msra.mxu0 %v110
    %130 = vmatprep.subr.bf16.mxu0 0
    %131 = vmatpush1.bf16.msra.mxu0 %v111
    %132 = vmatprep.subr.bf16.mxu0 0
    %133 = vmatpush1.bf16.msra.mxu0 %v112
    %134 = vmatprep.subr.bf16.mxu0 0
    %135 = vmatpush1.bf16.msra.mxu0 %v113
    %136 = vmatprep.subr.bf16.mxu0 0
    %137 = vmatpush1.bf16.msra.mxu0 %v114
    %138 = vmatprep.subr.bf16.mxu0 0
    %139 = vmatpush1.bf16.msra.mxu0 %v115
    %140 = vmatprep.subr.bf16.mxu0 0
    %141 = vmatpush1.bf16.msra.mxu0 0
    %142 = vmatprep.subr.bf16.mxu0 0
    %143 = vmatpush1.bf16.msra.mxu0 0
    %144 = vmatprep.subr.bf16.mxu0 0
    %145 = vmatpush1.bf16.msra.mxu0 0
    %146 = vmatprep.subr.bf16.mxu0 0
    %147 = vmatpush1.bf16.msra.mxu0 0
    %148 = vmatprep.subr.bf16.mxu0 0
    %149 = vmatpush1.bf16.msra.mxu0 0
    %150 = vmatprep.subr.bf16.mxu0 0
    %151 = vmatpush1.bf16.msra.mxu0 0
    %152 = vmatprep.subr.bf16.mxu0 0
    %153 = vmatpush1.bf16.msra.mxu0 0
    %154 = vmatprep.subr.bf16.mxu0 0
    %155 = vmatpush1.bf16.msra.mxu0 0
    %156 = vmatprep.mubr.bf16.mxu0 0
    %157 = vmatmul.mubr.bf16.gmra.mrb[0].mxu0 %v52
    %v158 = vpop.f32.mrb[0].mxu0
    %v159 = vadd.f32 %v74, %v158
    %v160 = vpop.f32.mrb[0].mxu0
    %v161 = vpop.f32.mrb[0].mxu0
    %v162 = vadd.f32 %v74, %v161
    %v163 = vpop.f32.mrb[0].mxu0
    %164 = vdwg.mxu0
    %v165 = vmul.f32 %v159, %v159
    %v166 = vmul.f32 %v162, %v162
    %v167 = vmul.f32 %v159, %v165
    %v168 = vmul.f32 %v162, %v166
    %v169 = vmul.f32 %v167, 0.044715
    %v170 = vmul.f32 %v168, 0.044715
    %v171 = vadd.f32 %v159, %v169
    %v172 = vadd.f32 %v162, %v170
    %v173 = vmul.f32 %v171, 0.7978846
    %v174 = vmul.f32 %v172, 0.7978846
    %v175 = vtanh.pop %v173
    %v176 = vtanh.pop %v174
    %v177 = vadd.f32 %v175, 1.0
    %v178 = vadd.f32 %v176, 1.0
    %v179 = vmul.f32 %v177, 0.5
    %v180 = vmul.f32 %v178, 0.5
    %v181 = vmul.f32 %v159, %v179
    %v182 = vmul.f32 %v162, %v180
    %183 = vadd.xlane.f32.xlu0 %v181
    %v184 = vpop.xlane.xlu0 %183
    %185 = vadd.xlane.f32.xlu0 %v182
    %v186 = vpop.xlane.xlu0 %185
    %v187 = vmul.f32 %v184, 0.0078125
    %v188 = vmul.f32 %v186, 0.0078125
    %v189 = vmul.f32 %v181, %v181
    %v190 = vmul.f32 %v182, %v182
    %191 = vadd.xlane.f32.xlu0 %v189
    %v192 = vpop.xlane.xlu0 %191
    %193 = vadd.xlane.f32.xlu0 %v190
    %v194 = vpop.xlane.xlu0 %193
    %v195 = vmul.f32 %v192, 0.0078125
    %v196 = vmul.f32 %v194, 0.0078125
    %v197 = vmul.f32 %v187, %v187
    %v198 = vmul.f32 %v188, %v188
    %v199 = vsub.f32 %v195, %v197
    %v200 = vsub.f32 %v196, %v198
    %v201 = vmax.f32 %v199, 0.0
    %v202 = vmax.f32 %v200, 0.0
    %v203 = vsub.f32 %v181, %v187
    %v204 = vsub.f32 %v182, %v188
    %v205 = vadd.f32 %v201, 1e-05
    %v206 = vadd.f32 %v202, 1e-05
    %v207 = vrsqrt.pop %v205
    %v208 = vrsqrt.pop %v206
    %v209 = vmul.f32 %v203, %v207
    %v210 = vmul.f32 %v204, %v208
    %v211 = vld [vmem:[%s3] sm:$0x1]
    %v213 = vlaneseq
    %v214 = vshrl.u32 %v213, 7
    %v215 = vsub.s32 0, %v214
    %v216 = vrot.slane %v211, %v215
    %v218 = vmul.f32 %v209, %v216
    %v219 = vmul.f32 %v210, %v216
    %v220 = vld [vmem:[%s4] sm:$0x1]
    %v222 = vlaneseq
    %v223 = vshrl.u32 %v222, 7
    %v224 = vsub.s32 0, %v223
    %v225 = vrot.slane %v220, %v224
    %v227 = vadd.f32 %v218, %v225
    %v228 = vadd.f32 %v219, %v225
    %v229 = vpack.c.bf16 %v228, %v227
    %v231 = vunpack.c.l.b16 %v229
    %v232 = vunpack.c.h.b16 %v229
    %v233 = vpack.c.b16 %v231, %v231
    %v234 = vpack.c.b16 %v232, %v232
    %237 = vst [vmem:[#allocation7] sm:$0xf] %v233
    %238 = vst [vmem:[#allocation7 + $0x4] sm:$0xf] %v234
    // Predicated region
    $region30: #{tpu_custom_call.1} parent=1 // pred_check
      _
    $region31: #{tpu_custom_call.1} parent=1 // pred_check_branch
      %240 = sbr.rel (0) target = $region33
    $region32: #{tpu_custom_call.1} parent=1 // pred_region
      %s242 = ssub.s32 128, 128
      %243 = vsyncadd [#allocation4], %s242
      %s244 = sshll.u32 [#allocation7], 4
      %s245 = int_to_ptr.vmem [resolvable:$true] %s244
      %250 = dma.vmem_to_hbm [thread:$0]  %s245, 128, %s5, [#allocation4], 64, 64, 4
    $region33: #{tpu_custom_call.1} parent=1 // pred_fallthru
      _
    // Predicated region
    $region34: #{tpu_custom_call.1} parent=1 // pred_check
      _
    $region35: #{tpu_custom_call.1} parent=1 // pred_check_branch
      %252 = sbr.rel (0) target = $region37
    $region36: #{tpu_custom_call.1} parent=1 // pred_region
      %253 = dma.done [#allocation4], 128
    $region37: #{tpu_custom_call.1} parent=1 // pred_fallthru
      _
    %254 = vsyncpa [#allocation3], 1
    %255 = vsyncpa [#allocation6], 1
    %256 = vsyncpa [#allocation4], 1

</llo_original>
